<compile_context>
chip_gen: v6e
topology: v6e:2x2x1
jax: 0.10.0
libtpu: 0.0.40
codegen_flags: <defaults>
</compile_context>

<pallas_src>
import functools

import jax
import jax.numpy as jnp
from jax import lax
from jax.experimental import pallas as pl
from jax.experimental.pallas import tpu as pltpu


LN_EPS = 1e-5
LANE = 128


def _round_up(n, m):
    return ((n + m - 1) // m) * m


def _dqn_kernel(x_ref, w1_ref, w2_ref, w3_ref, wo_ref, vec_ref, o_ref,
                *, hidden, out_pad, action_dim):
    """Fused MLP forward: 3x (Linear -> LayerNorm -> ReLU) -> Linear.

    vec_ref packs every small per-layer vector into one (10, vec_w) f32 array:
      rows 0..2 : b1, gamma1, beta1
      rows 3..5 : b2, gamma2, beta2
      rows 6..8 : b3, gamma3, beta3
      row  9    : bo (zero-padded to out_pad lanes)
    Weights are bf16; matmuls accumulate in f32 on the MXU; LayerNorm / bias /
    ReLU stay in f32.
    """

    def linear(h, w_ref, b):
        return jnp.dot(h.astype(jnp.bfloat16), w_ref[...],
                       preferred_element_type=jnp.float32) + b

    def ln_relu(h, g, b):
        # Two-pass LayerNorm (same form as nn.LayerNorm; numerically stable).
        mu = jnp.mean(h, axis=-1, keepdims=True)
        var = jnp.mean(jnp.square(h - mu), axis=-1, keepdims=True)
        y = (h - mu) * lax.rsqrt(var + LN_EPS)
        return jnp.maximum(y * g + b, 0.0)

    v = vec_ref[...]
    h = x_ref[...].astype(jnp.float32)
    h = ln_relu(linear(h, w1_ref, v[0:1, :hidden]), v[1:2, :hidden], v[2:3, :hidden])
    h = ln_relu(linear(h, w2_ref, v[3:4, :hidden]), v[4:5, :hidden], v[5:6, :hidden])
    h = ln_relu(linear(h, w3_ref, v[6:7, :hidden]), v[7:8, :hidden], v[8:9, :hidden])
    q = linear(h, wo_ref, v[9:10, :out_pad])            # (tm, out_pad) f32
    # Native-width store: only the real action columns go back to HBM.
    o_ref[...] = q[:, :action_dim].astype(o_ref.dtype)


def pack_dqn_params(params, state_dim, action_dim):
    """One-time prep: bf16 weights (head lane-padded) + packed small vectors."""
    hidden = params["w1"].shape[1]
    out_pad = _round_up(action_dim, LANE)      # lane-dense MXU N for the head
    vec_w = max(hidden, out_pad)

    def pad_to(a, shape):
        return jnp.pad(a, [(0, s - d) for d, s in zip(a.shape, shape)])

    wo_p = pad_to(params["wo"], (hidden, out_pad))

    rows = [
        params["b1"], params["g1"], params["be1"],
        params["b2"], params["g2"], params["be2"],
        params["b3"], params["g3"], params["be3"],
        params["bo"],
    ]
    rows = [pad_to(r.reshape(1, -1).astype(jnp.float32), (1, vec_w)) for r in rows]
    vecs = jnp.concatenate(rows, axis=0)       # (10, vec_w) f32

    return dict(
        hidden=hidden, out_pad=out_pad, vec_w=vec_w, action_dim=action_dim,
        w1=params["w1"].astype(jnp.bfloat16),  # (state_dim, hidden), native K
        w2=params["w2"].astype(jnp.bfloat16),
        w3=params["w3"].astype(jnp.bfloat16),
        wo=wo_p.astype(jnp.bfloat16),          # (hidden, out_pad)
        vecs=vecs,
    )


def dqn_forward(x, packed, *, batch_tile=1024):
    """Run the fused DQN forward Pallas kernel.

    x:      (B, state_dim) float32
    packed: output of pack_dqn_params
    returns (B, action_dim) float32 Q-values
    """
    B, state_dim = x.shape
    hidden = packed["hidden"]
    out_pad = packed["out_pad"]
    vec_w = packed["vec_w"]
    action_dim = packed["action_dim"]

    x = x.astype(jnp.float32)
    kernel = functools.partial(_dqn_kernel, hidden=hidden, out_pad=out_pad,
                               action_dim=action_dim)
    weights = (packed["w1"], packed["w2"], packed["w3"], packed["wo"],
               packed["vecs"])

    if B <= batch_tile:
        # Small / per-step acting batch: grid-less call, every operand is a
        # whole-array VMEM ref (no pipelining scaffolding, no double buffers).
        B_pad = _round_up(max(B, 1), 8)        # avoid masked partial stores
        x_p = jnp.pad(x, ((0, B_pad - B), (0, 0))) if B_pad != B else x
        q = pl.pallas_call(
            kernel,
            out_shape=jax.ShapeDtypeStruct((B_pad, action_dim), jnp.float32),
            in_specs=[pl.BlockSpec(memory_space=pltpu.MemorySpace.VMEM)] * 6,
            out_specs=pl.BlockSpec(memory_space=pltpu.MemorySpace.VMEM),
        )(x_p, *weights)
        return q[:B]

    # Training / replay batch: tile the batch axis, keep weights resident
    # (constant index_map -> the pipeline does not re-DMA them each step), and
    # mark the batch axis parallel so both TensorCores work on v7x.
    # B > batch_tile guarantees >= 2 grid steps.
    tm = batch_tile
    B_pad = _round_up(B, tm)
    x_p = jnp.pad(x, ((0, B_pad - B), (0, 0)))

    cp_kwargs = dict(dimension_semantics=("parallel",))
    if tm > 4096:
        # Only very large tiles approach v5e's 16 MiB default scoped-VMEM
        # limit; 48 MiB stays under every generation's physical VMEM.
        cp_kwargs["vmem_limit_bytes"] = 48 * 1024 * 1024

    q = pl.pallas_call(
        kernel,
        out_shape=jax.ShapeDtypeStruct((B_pad, action_dim), jnp.float32),
        grid_spec=pltpu.PrefetchScalarGridSpec(
            num_scalar_prefetch=0,
            grid=(B_pad // tm,),
            in_specs=[
                pl.BlockSpec((tm, state_dim), lambda i: (i, 0)),
                pl.BlockSpec((state_dim, hidden), lambda i: (0, 0)),
                pl.BlockSpec((hidden, hidden), lambda i: (0, 0)),
                pl.BlockSpec((hidden, hidden), lambda i: (0, 0)),
                pl.BlockSpec((hidden, out_pad), lambda i: (0, 0)),
                pl.BlockSpec((10, vec_w), lambda i: (0, 0)),
            ],
            out_specs=pl.BlockSpec((tm, action_dim), lambda i: (i, 0)),
        ),
        compiler_params=pltpu.CompilerParams(**cp_kwargs),
    )(x_p, *weights)
    return q[:B]


def init_dqn_params(key, state_dim, action_dim, hidden_dim=128):
    """Init mimicking PyTorch nn.Linear defaults
    (uniform(-1/sqrt(fan_in), 1/sqrt(fan_in))); LayerNorm gamma=1, beta=0.
    Weights are stored as (in_features, out_features)."""
    keys = jax.random.split(key, 8)

    def lin_init(kw, kb, fan_in, fan_out):
        bound = 1.0 / jnp.sqrt(fan_in)
        w = jax.random.uniform(kw, (fan_in, fan_out), jnp.float32, -bound, bound)
        b = jax.random.uniform(kb, (1, fan_out), jnp.float32, -bound, bound)
        return w, b

    w1, b1 = lin_init(keys[0], keys[1], state_dim, hidden_dim)
    w2, b2 = lin_init(keys[2], keys[3], hidden_dim, hidden_dim)
    w3, b3 = lin_init(keys[4], keys[5], hidden_dim, hidden_dim)
    wo, bo = lin_init(keys[6], keys[7], hidden_dim, action_dim)

    ones = jnp.ones((1, hidden_dim), jnp.float32)
    zeros = jnp.zeros((1, hidden_dim), jnp.float32)

    return dict(
        w1=w1, b1=b1, g1=ones, be1=zeros,
        w2=w2, b2=b2, g2=ones, be2=zeros,
        w3=w3, b3=b3, g3=ones, be3=zeros,
        wo=wo, bo=bo,
    )


def dqn_forward_ref(x, p, matmul_dtype=jnp.float32):
    """Pure-JAX reference (matches nn.LayerNorm).  matmul_dtype=bf16 mimics the
    kernel's MXU input precision exactly (accumulation stays f32)."""
    def linear(h, w, b):
        return jnp.dot(h.astype(matmul_dtype), w.astype(matmul_dtype),
                       preferred_element_type=jnp.float32) + b

    def ln_relu(h, g, b):
        mu = jnp.mean(h, axis=-1, keepdims=True)
        var = jnp.mean((h - mu) ** 2, axis=-1, keepdims=True)
        return jnp.maximum((h - mu) * lax.rsqrt(var + LN_EPS) * g + b, 0.0)

    h = ln_relu(linear(x, p["w1"], p["b1"]), p["g1"], p["be1"])
    h = ln_relu(linear(h, p["w2"], p["b2"]), p["g2"], p["be2"])
    h = ln_relu(linear(h, p["w3"], p["b3"]), p["g3"], p["be3"])
    return linear(h, p["wo"], p["bo"])


if __name__ == "__main__":
    key = jax.random.PRNGKey(0)
    k_params, k_x1, k_x2 = jax.random.split(key, 3)

    state_dim, action_dim, hidden_dim = 16, 4, 128
    params = init_dqn_params(k_params, state_dim, action_dim, hidden_dim)
    packed = pack_dqn_params(params, state_dim, action_dim)

    # Small acting batch -> grid-less path.
    x_small = jax.random.normal(k_x1, (8, state_dim), jnp.float32)
    q_small = jax.block_until_ready(dqn_forward(x_small, packed))

    # Replay batch with a small tile override -> batch-tiled (parallel) path.
    x_big = jax.random.normal(k_x2, (384, state_dim), jnp.float32)
    q_big = jax.block_until_ready(dqn_forward(x_big, packed, batch_tile=128))

    for x_t, q_t in ((x_small, q_small), (x_big, q_big)):
        assert q_t.shape == (x_t.shape[0], action_dim)
        q_bf = dqn_forward_ref(x_t, params, matmul_dtype=jnp.bfloat16)
        q_fp = dqn_forward_ref(x_t, params, matmul_dtype=jnp.float32)
        # Exact-math check (bf16 matmul inputs, f32 everything else).
        assert jnp.allclose(q_t, q_bf, atol=5e-3, rtol=5e-3), "mismatch vs bf16 ref"
        # Accuracy sanity check against the full-f32 nn.Module math.
        assert jnp.allclose(q_t, q_fp, atol=1e-1, rtol=1e-1), "mismatch vs f32 ref"

    print("KERNEL_OK")
</pallas_src>

<mosaic_0001>
module attributes {stable_mosaic.version = 11 : i64} {
  func.func @_dqn_kernel(%arg0: memref<8x16xf32, #tpu.memory_space<vmem>>, %arg1: memref<16x128xbf16, #tpu.memory_space<vmem>>, %arg2: memref<128x128xbf16, #tpu.memory_space<vmem>>, %arg3: memref<128x128xbf16, #tpu.memory_space<vmem>>, %arg4: memref<128x128xbf16, #tpu.memory_space<vmem>>, %arg5: memref<10x128xf32, #tpu.memory_space<vmem>>, %arg6: memref<8x4xf32, #tpu.memory_space<vmem>>) attributes {dimension_semantics = [], scalar_prefetch = 0 : i64, scratch_operands = 0 : i64, tpu.core_type = #tpu.core_type<tc>} {
    %c0 = arith.constant 0 : index
    %c0_0 = arith.constant 0 : index
    %0 = vector.load %arg5[%c0, %c0_0] : memref<10x128xf32, #tpu.memory_space<vmem>>, vector<10x128xf32>
    %c0_1 = arith.constant 0 : index
    %c0_2 = arith.constant 0 : index
    %1 = vector.load %arg0[%c0_1, %c0_2] : memref<8x16xf32, #tpu.memory_space<vmem>>, vector<8x16xf32>
    %2 = vector.extract_strided_slice %0 {offsets = [0, 0], sizes = [1, 128], strides = [1, 1]} : vector<10x128xf32> to vector<1x128xf32>
    %3 = arith.truncf %1 : vector<8x16xf32> to vector<8x16xbf16>
    %c0_3 = arith.constant 0 : index
    %c0_4 = arith.constant 0 : index
    %4 = vector.load %arg1[%c0_3, %c0_4] : memref<16x128xbf16, #tpu.memory_space<vmem>>, vector<16x128xbf16>
    %cst = arith.constant dense<0.000000e+00> : vector<8x128xf32>
    %5 = tpu.matmul %3, %4, %cst {dimension_numbers = #tpu.dot_dimension_numbers<[1], [0], [0], [1], [0, 0, 1, 1], [], []>} : vector<8x16xbf16>, vector<16x128xbf16>, vector<8x128xf32> -> vector<8x128xf32>
    %6 = vector.broadcast %2 : vector<1x128xf32> to vector<8x128xf32>
    %7 = arith.addf %5, %6 : vector<8x128xf32>
    %8 = vector.extract_strided_slice %0 {offsets = [1, 0], sizes = [1, 128], strides = [1, 1]} : vector<10x128xf32> to vector<1x128xf32>
    %9 = vector.extract_strided_slice %0 {offsets = [2, 0], sizes = [1, 128], strides = [1, 1]} : vector<10x128xf32> to vector<1x128xf32>
    %cst_5 = arith.constant dense<0.000000e+00> : vector<8xf32>
    %10 = vector.multi_reduction <add>, %7, %cst_5 [1] : vector<8x128xf32> to vector<8xf32>
    %11 = vector.shape_cast %10 : vector<8xf32> to vector<8x1xf32>
    %cst_6 = arith.constant 1.280000e+02 : f32
    %12 = vector.broadcast %cst_6 : f32 to vector<8x1xf32>
    %13 = arith.divf %11, %12 : vector<8x1xf32>
    %14 = vector.broadcast %13 : vector<8x1xf32> to vector<8x128xf32>
    %15 = arith.subf %7, %14 : vector<8x128xf32>
    %16 = arith.mulf %15, %15 : vector<8x128xf32>
    %cst_7 = arith.constant dense<0.000000e+00> : vector<8xf32>
    %17 = vector.multi_reduction <add>, %16, %cst_7 [1] : vector<8x128xf32> to vector<8xf32>
    %18 = vector.shape_cast %17 : vector<8xf32> to vector<8x1xf32>
    %cst_8 = arith.constant 1.280000e+02 : f32
    %19 = vector.broadcast %cst_8 : f32 to vector<8x1xf32>
    %20 = arith.divf %18, %19 : vector<8x1xf32>
    %21 = vector.broadcast %13 : vector<8x1xf32> to vector<8x128xf32>
    %22 = arith.subf %7, %21 : vector<8x128xf32>
    %cst_9 = arith.constant 9.99999974E-6 : f32
    %23 = vector.broadcast %cst_9 : f32 to vector<8x1xf32>
    %24 = arith.addf %20, %23 : vector<8x1xf32>
    %25 = math.rsqrt %24 : vector<8x1xf32>
    %26 = vector.broadcast %25 : vector<8x1xf32> to vector<8x128xf32>
    %27 = arith.mulf %22, %26 : vector<8x128xf32>
    %28 = vector.broadcast %8 : vector<1x128xf32> to vector<8x128xf32>
    %29 = arith.mulf %27, %28 : vector<8x128xf32>
    %30 = vector.broadcast %9 : vector<1x128xf32> to vector<8x128xf32>
    %31 = arith.addf %29, %30 : vector<8x128xf32>
    %cst_10 = arith.constant 0.000000e+00 : f32
    %32 = vector.broadcast %cst_10 : f32 to vector<8x128xf32>
    %33 = arith.maximumf %31, %32 : vector<8x128xf32>
    %34 = vector.extract_strided_slice %0 {offsets = [3, 0], sizes = [1, 128], strides = [1, 1]} : vector<10x128xf32> to vector<1x128xf32>
    %35 = arith.truncf %33 : vector<8x128xf32> to vector<8x128xbf16>
    %c0_11 = arith.constant 0 : index
    %c0_12 = arith.constant 0 : index
    %36 = vector.load %arg2[%c0_11, %c0_12] : memref<128x128xbf16, #tpu.memory_space<vmem>>, vector<128x128xbf16>
    %cst_13 = arith.constant dense<0.000000e+00> : vector<8x128xf32>
    %37 = tpu.matmul %35, %36, %cst_13 {dimension_numbers = #tpu.dot_dimension_numbers<[1], [0], [0], [1], [0, 0, 1, 1], [], []>} : vector<8x128xbf16>, vector<128x128xbf16>, vector<8x128xf32> -> vector<8x128xf32>
    %38 = vector.broadcast %34 : vector<1x128xf32> to vector<8x128xf32>
    %39 = arith.addf %37, %38 : vector<8x128xf32>
    %40 = vector.extract_strided_slice %0 {offsets = [4, 0], sizes = [1, 128], strides = [1, 1]} : vector<10x128xf32> to vector<1x128xf32>
    %41 = vector.extract_strided_slice %0 {offsets = [5, 0], sizes = [1, 128], strides = [1, 1]} : vector<10x128xf32> to vector<1x128xf32>
    %cst_14 = arith.constant dense<0.000000e+00> : vector<8xf32>
    %42 = vector.multi_reduction <add>, %39, %cst_14 [1] : vector<8x128xf32> to vector<8xf32>
    %43 = vector.shape_cast %42 : vector<8xf32> to vector<8x1xf32>
    %cst_15 = arith.constant 1.280000e+02 : f32
    %44 = vector.broadcast %cst_15 : f32 to vector<8x1xf32>
    %45 = arith.divf %43, %44 : vector<8x1xf32>
    %46 = vector.broadcast %45 : vector<8x1xf32> to vector<8x128xf32>
    %47 = arith.subf %39, %46 : vector<8x128xf32>
    %48 = arith.mulf %47, %47 : vector<8x128xf32>
    %cst_16 = arith.constant dense<0.000000e+00> : vector<8xf32>
    %49 = vector.multi_reduction <add>, %48, %cst_16 [1] : vector<8x128xf32> to vector<8xf32>
    %50 = vector.shape_cast %49 : vector<8xf32> to vector<8x1xf32>
    %cst_17 = arith.constant 1.280000e+02 : f32
    %51 = vector.broadcast %cst_17 : f32 to vector<8x1xf32>
    %52 = arith.divf %50, %51 : vector<8x1xf32>
    %53 = vector.broadcast %45 : vector<8x1xf32> to vector<8x128xf32>
    %54 = arith.subf %39, %53 : vector<8x128xf32>
    %cst_18 = arith.constant 9.99999974E-6 : f32
    %55 = vector.broadcast %cst_18 : f32 to vector<8x1xf32>
    %56 = arith.addf %52, %55 : vector<8x1xf32>
    %57 = math.rsqrt %56 : vector<8x1xf32>
    %58 = vector.broadcast %57 : vector<8x1xf32> to vector<8x128xf32>
    %59 = arith.mulf %54, %58 : vector<8x128xf32>
    %60 = vector.broadcast %40 : vector<1x128xf32> to vector<8x128xf32>
    %61 = arith.mulf %59, %60 : vector<8x128xf32>
    %62 = vector.broadcast %41 : vector<1x128xf32> to vector<8x128xf32>
    %63 = arith.addf %61, %62 : vector<8x128xf32>
    %cst_19 = arith.constant 0.000000e+00 : f32
    %64 = vector.broadcast %cst_19 : f32 to vector<8x128xf32>
    %65 = arith.maximumf %63, %64 : vector<8x128xf32>
    %66 = vector.extract_strided_slice %0 {offsets = [6, 0], sizes = [1, 128], strides = [1, 1]} : vector<10x128xf32> to vector<1x128xf32>
    %67 = arith.truncf %65 : vector<8x128xf32> to vector<8x128xbf16>
    %c0_20 = arith.constant 0 : index
    %c0_21 = arith.constant 0 : index
    %68 = vector.load %arg3[%c0_20, %c0_21] : memref<128x128xbf16, #tpu.memory_space<vmem>>, vector<128x128xbf16>
    %cst_22 = arith.constant dense<0.000000e+00> : vector<8x128xf32>
    %69 = tpu.matmul %67, %68, %cst_22 {dimension_numbers = #tpu.dot_dimension_numbers<[1], [0], [0], [1], [0, 0, 1, 1], [], []>} : vector<8x128xbf16>, vector<128x128xbf16>, vector<8x128xf32> -> vector<8x128xf32>
    %70 = vector.broadcast %66 : vector<1x128xf32> to vector<8x128xf32>
    %71 = arith.addf %69, %70 : vector<8x128xf32>
    %72 = vector.extract_strided_slice %0 {offsets = [7, 0], sizes = [1, 128], strides = [1, 1]} : vector<10x128xf32> to vector<1x128xf32>
    %73 = vector.extract_strided_slice %0 {offsets = [8, 0], sizes = [1, 128], strides = [1, 1]} : vector<10x128xf32> to vector<1x128xf32>
    %cst_23 = arith.constant dense<0.000000e+00> : vector<8xf32>
    %74 = vector.multi_reduction <add>, %71, %cst_23 [1] : vector<8x128xf32> to vector<8xf32>
    %75 = vector.shape_cast %74 : vector<8xf32> to vector<8x1xf32>
    %cst_24 = arith.constant 1.280000e+02 : f32
    %76 = vector.broadcast %cst_24 : f32 to vector<8x1xf32>
    %77 = arith.divf %75, %76 : vector<8x1xf32>
    %78 = vector.broadcast %77 : vector<8x1xf32> to vector<8x128xf32>
    %79 = arith.subf %71, %78 : vector<8x128xf32>
    %80 = arith.mulf %79, %79 : vector<8x128xf32>
    %cst_25 = arith.constant dense<0.000000e+00> : vector<8xf32>
    %81 = vector.multi_reduction <add>, %80, %cst_25 [1] : vector<8x128xf32> to vector<8xf32>
    %82 = vector.shape_cast %81 : vector<8xf32> to vector<8x1xf32>
    %cst_26 = arith.constant 1.280000e+02 : f32
    %83 = vector.broadcast %cst_26 : f32 to vector<8x1xf32>
    %84 = arith.divf %82, %83 : vector<8x1xf32>
    %85 = vector.broadcast %77 : vector<8x1xf32> to vector<8x128xf32>
    %86 = arith.subf %71, %85 : vector<8x128xf32>
    %cst_27 = arith.constant 9.99999974E-6 : f32
    %87 = vector.broadcast %cst_27 : f32 to vector<8x1xf32>
    %88 = arith.addf %84, %87 : vector<8x1xf32>
    %89 = math.rsqrt %88 : vector<8x1xf32>
    %90 = vector.broadcast %89 : vector<8x1xf32> to vector<8x128xf32>
    %91 = arith.mulf %86, %90 : vector<8x128xf32>
    %92 = vector.broadcast %72 : vector<1x128xf32> to vector<8x128xf32>
    %93 = arith.mulf %91, %92 : vector<8x128xf32>
    %94 = vector.broadcast %73 : vector<1x128xf32> to vector<8x128xf32>
    %95 = arith.addf %93, %94 : vector<8x128xf32>
    %cst_28 = arith.constant 0.000000e+00 : f32
    %96 = vector.broadcast %cst_28 : f32 to vector<8x128xf32>
    %97 = arith.maximumf %95, %96 : vector<8x128xf32>
    %98 = vector.extract_strided_slice %0 {offsets = [9, 0], sizes = [1, 128], strides = [1, 1]} : vector<10x128xf32> to vector<1x128xf32>
    %99 = arith.truncf %97 : vector<8x128xf32> to vector<8x128xbf16>
    %c0_29 = arith.constant 0 : index
    %c0_30 = arith.constant 0 : index
    %100 = vector.load %arg4[%c0_29, %c0_30] : memref<128x128xbf16, #tpu.memory_space<vmem>>, vector<128x128xbf16>
    %cst_31 = arith.constant dense<0.000000e+00> : vector<8x128xf32>
    %101 = tpu.matmul %99, %100, %cst_31 {dimension_numbers = #tpu.dot_dimension_numbers<[1], [0], [0], [1], [0, 0, 1, 1], [], []>} : vector<8x128xbf16>, vector<128x128xbf16>, vector<8x128xf32> -> vector<8x128xf32>
    %102 = vector.broadcast %98 : vector<1x128xf32> to vector<8x128xf32>
    %103 = arith.addf %101, %102 : vector<8x128xf32>
    %104 = vector.extract_strided_slice %103 {offsets = [0, 0], sizes = [8, 4], strides = [1, 1]} : vector<8x128xf32> to vector<8x4xf32>
    %c0_32 = arith.constant 0 : index
    %c0_33 = arith.constant 0 : index
    %105 = vector.load %arg6[%c0_32, %c0_33] : memref<8x4xf32, #tpu.memory_space<vmem>>, vector<8x4xf32>
    tpu.vector_store %arg6[%c0_32, %c0_33], %104 {strides = array<i32>} : memref<8x4xf32, #tpu.memory_space<vmem>>, vector<8x4xf32>,
    return
  }
}

</mosaic_0001>

<llo_original>
// kernel: tpu_custom_call.1
$region0: #{tpu_custom_call.1}
  #allocation0 [shape = 'u32[]', space=smem, size = 0x4, offset = 0x4, fixed_abs, tag = 'smem constant byte address 0x4 - core index']
  #allocation1 [shape = 'u32[144,128]{1,0:T(1,128)}', space=vmem, size = 0x12000, scoped, tag = 'internal scratch']
  %s0 = inlined_call_operand.hbm [shape: f32[8,16], index: 0, kind: input, shape index: {}]
  %s1 = inlined_call_operand.hbm [shape: bf16[16,128], index: 1, kind: input, shape index: {}]
  %s2 = inlined_call_operand.hbm [shape: bf16[128,128], index: 2, kind: input, shape index: {}]
  %s3 = inlined_call_operand.hbm [shape: bf16[128,128], index: 3, kind: input, shape index: {}]
  %s4 = inlined_call_operand.hbm [shape: bf16[128,128], index: 4, kind: input, shape index: {}]
  %s5 = inlined_call_operand.hbm [shape: f32[10,128], index: 5, kind: input, shape index: {}]
  %s6 = inlined_call_operand.vmem [shape: f32[8,4], index: 6, kind: output, shape index: {}]
  %s7 = sld [smem:[#allocation0]]
  $region58: #{tpu_custom_call.1} parent=0
    _
  %s9 = ssub.s32 1, %s7
  %s10 = scalar_select 0, %s9, %s7
  $region1: #{tpu_custom_call.1} parent=0
    #allocation2 [shape = 'u8[4096]{0}', space=vmem, size = 0x1000, scoped, tag = 'input window, operand 0, single buffered']
    #allocation3 [shape = 's32[1]{0}', space=sflag, size = 0x4, scoped, tag = 'scoped memory for tpu_custom_call.1']
    #allocation4 [shape = 'u8[4096]{0}', space=vmem, size = 0x1000, scoped, tag = 'input window, operand 1, single buffered']
    #allocation5 [shape = 's32[1]{0}', space=sflag, size = 0x4, scoped, tag = 'scoped memory for tpu_custom_call.1']
    #allocation6 [shape = 'u8[32768]{0}', space=vmem, size = 0x8000, scoped, tag = 'input window, operand 2, single buffered']
    #allocation7 [shape = 'u8[32768]{0}', space=vmem, size = 0x8000, scoped, tag = 'input window, operand 3, single buffered']
    #allocation8 [shape = 's32[1]{0}', space=sflag, size = 0x4, scoped, tag = 'scoped memory for tpu_custom_call.1']
    #allocation9 [shape = 'u8[32768]{0}', space=vmem, size = 0x8000, scoped, tag = 'input window, operand 4, single buffered']
    #allocation10 [shape = 'u8[8192]{0}', space=vmem, size = 0x2000, scoped, tag = 'input window, operand 5, single buffered']
    #allocation11 [shape = 's32[1]{0}', space=sflag, size = 0x4, scoped, tag = 'scoped memory for tpu_custom_call.1']
    %11 = vsyncpa [#allocation3], 0
    %12 = vsyncpa [#allocation5], 0
    %13 = vsyncpa [#allocation8], 0
    %14 = vsyncpa [#allocation11], 0
    // Predicated region
    $region2: #{tpu_custom_call.1} parent=1 // pred_check
      _
    $region3: #{tpu_custom_call.1} parent=1 // pred_check_branch
      %16 = sbr.rel (0) target = $region5
    $region4: #{tpu_custom_call.1} parent=1 // pred_region
      %s18 = ssub.s32 128, 128
      %19 = vsyncadd [#allocation3], %s18
      %s21 = sshll.u32 [#allocation2], 4
      %s22 = int_to_ptr.vmem [resolvable:$true] %s21
      %24 = dma.hbm_to_vmem [thread:$0]  %s0, 128, %s22, [#allocation3]
    $region5: #{tpu_custom_call.1} parent=1 // pred_fallthru
      _
    // Predicated region
    $region6: #{tpu_custom_call.1} parent=1 // pred_check
      _
    $region7: #{tpu_custom_call.1} parent=1 // pred_check_branch
      %26 = sbr.rel (0) target = $region9
    $region8: #{tpu_custom_call.1} parent=1 // pred_region
      %s28 = ssub.s32 128, 128
      %29 = vsyncadd [#allocation5], %s28
      %s30 = sshll.u32 [#allocation4], 4
      %s31 = int_to_ptr.vmem [resolvable:$true] %s30
      %36 = dma.hbm_to_vmem [thread:$0]  %s1, 128, %s31, [#allocation5], 64, 64, 4
    $region9: #{tpu_custom_call.1} parent=1 // pred_fallthru
      _
    // Predicated region
    $region10: #{tpu_custom_call.1} parent=1 // pred_check
      _
    $region11: #{tpu_custom_call.1} parent=1 // pred_check_branch
      %38 = sbr.rel (0) target = $region13
    $region12: #{tpu_custom_call.1} parent=1 // pred_region
      %s40 = ssub.s32 1024, 1024
      %41 = vsyncadd [#allocation5], %s40
      %s42 = sshll.u32 [#allocation6], 4
      %s43 = int_to_ptr.vmem [resolvable:$true] %s42
      %48 = dma.hbm_to_vmem [thread:$0]  %s2, 1024, %s43, [#allocation5], 64, 64, 4
    $region13: #{tpu_custom_call.1} parent=1 // pred_fallthru
      _
    // Predicated region
    $region14: #{tpu_custom_call.1} parent=1 // pred_check
      _
    $region15: #{tpu_custom_call.1} parent=1 // pred_check_branch
      %50 = sbr.rel (0) target = $region17
    $region16: #{tpu_custom_call.1} parent=1 // pred_region
      %s52 = ssub.s32 1024, 1024
      %53 = vsyncadd [#allocation8], %s52
      %s54 = sshll.u32 [#allocation7], 4
      %s55 = int_to_ptr.vmem [resolvable:$true] %s54
      %60 = dma.hbm_to_vmem [thread:$0]  %s3, 1024, %s55, [#allocation8], 64, 64, 4
    $region17: #{tpu_custom_call.1} parent=1 // pred_fallthru
      _
    // Predicated region
    $region18: #{tpu_custom_call.1} parent=1 // pred_check
      _
    $region19: #{tpu_custom_call.1} parent=1 // pred_check_branch
      %62 = sbr.rel (0) target = $region21
    $region20: #{tpu_custom_call.1} parent=1 // pred_region
      %s64 = ssub.s32 1024, 1024
      %65 = vsyncadd [#allocation8], %s64
      %s66 = sshll.u32 [#allocation9], 4
      %s67 = int_to_ptr.vmem [resolvable:$true] %s66
      %72 = dma.hbm_to_vmem [thread:$0]  %s4, 1024, %s67, [#allocation8], 64, 64, 4
    $region21: #{tpu_custom_call.1} parent=1 // pred_fallthru
      _
    // Predicated region
    $region22: #{tpu_custom_call.1} parent=1 // pred_check
      _
    $region23: #{tpu_custom_call.1} parent=1 // pred_check_branch
      %74 = sbr.rel (0) target = $region25
    $region24: #{tpu_custom_call.1} parent=1 // pred_region
      %s76 = ssub.s32 256, 256
      %77 = vsyncadd [#allocation11], %s76
      %s78 = sshll.u32 [#allocation10], 4
      %s79 = int_to_ptr.vmem [resolvable:$true] %s78
      %84 = dma.hbm_to_vmem [thread:$0]  %s5, 256, %s79, [#allocation11], 128, 128, 8
    $region25: #{tpu_custom_call.1} parent=1 // pred_fallthru
      _
    // Predicated region
    $region26: #{tpu_custom_call.1} parent=1 // pred_check
      _
    $region27: #{tpu_custom_call.1} parent=1 // pred_check_branch
      %86 = sbr.rel (0) target = $region29
    $region28: #{tpu_custom_call.1} parent=1 // pred_region
      %87 = dma.done [#allocation3], 128
    $region29: #{tpu_custom_call.1} parent=1 // pred_fallthru
      _
    // Predicated region
    $region30: #{tpu_custom_call.1} parent=1 // pred_check
      _
    $region31: #{tpu_custom_call.1} parent=1 // pred_check_branch
      %89 = sbr.rel (0) target = $region33
    $region32: #{tpu_custom_call.1} parent=1 // pred_region
      %90 = dma.done [#allocation5], 128
    $region33: #{tpu_custom_call.1} parent=1 // pred_fallthru
      _
    // Predicated region
    $region34: #{tpu_custom_call.1} parent=1 // pred_check
      _
    $region35: #{tpu_custom_call.1} parent=1 // pred_check_branch
      %92 = sbr.rel (0) target = $region37
    $region36: #{tpu_custom_call.1} parent=1 // pred_region
      %93 = dma.done [#allocation5], 1024
    $region37: #{tpu_custom_call.1} parent=1 // pred_fallthru
      _
    // Predicated region
    $region38: #{tpu_custom_call.1} parent=1 // pred_check
      _
    $region39: #{tpu_custom_call.1} parent=1 // pred_check_branch
      %95 = sbr.rel (0) target = $region41
    $region40: #{tpu_custom_call.1} parent=1 // pred_region
      %96 = dma.done [#allocation8], 1024
    $region41: #{tpu_custom_call.1} parent=1 // pred_fallthru
      _
    // Predicated region
    $region42: #{tpu_custom_call.1} parent=1 // pred_check
      _
    $region43: #{tpu_custom_call.1} parent=1 // pred_check_branch
      %98 = sbr.rel (0) target = $region45
    $region44: #{tpu_custom_call.1} parent=1 // pred_region
      %99 = dma.done [#allocation8], 1024
    $region45: #{tpu_custom_call.1} parent=1 // pred_fallthru
      _
    // Predicated region
    $region46: #{tpu_custom_call.1} parent=1 // pred_check
      _
    $region47: #{tpu_custom_call.1} parent=1 // pred_check_branch
      %101 = sbr.rel (0) target = $region49
    $region48: #{tpu_custom_call.1} parent=1 // pred_region
      %102 = dma.done [#allocation11], 256
    $region49: #{tpu_custom_call.1} parent=1 // pred_fallthru
      _
    %v104 = vld [vmem:[#allocation10] sm:$0xff]
    %v105 = vld [vmem:[#allocation10 + $0x8] sm:$0x3]
    %v106 = vld [vmem:[#allocation2] sm:$0xff]
    %v107 = vpack.c.bf16 %v106, %v106
    %v108 = vld [vmem:[#allocation4] sm:$0xf]
    %v109 = vld [vmem:[#allocation4 + $0x4] sm:$0xf]
    %v110 = vlaneseq
    %v111 = vshrl.u32 %v110, 7
    %v112 = vsub.s32 0, %v111
    %v113 = vrot.slane %v104, %v112
    %v116 = vunpack.c.l.b16 %v108
    %v117 = vunpack.c.l.b16 %v109
    %v118 = vpack.c.b16 %v117, %v116
    %vm120 = vcmask 130048
    %v122 = vsel %vm120, %v107, 0
    %124 = vmatprep.subr.bf16.mxu0 0
    %125 = vmatpush1.bf16.msra.mxu0 0
    %126 = vmatprep.subr.bf16.mxu0 0
    %127 = vmatpush1.bf16.msra.mxu0 0
    %128 = vmatprep.subr.bf16.mxu0 0
    %129 = vmatpush1.bf16.msra.mxu0 0
    %130 = vmatprep.subr.bf16.mxu0 0
    %131 = vmatpush1.bf16.msra.mxu0 0
    %132 = vmatprep.subr.bf16.mxu0 0
    %133 = vmatpush1.bf16.msra.mxu0 0
    %134 = vmatprep.subr.bf16.mxu0 0
    %135 = vmatpush1.bf16.msra.mxu0 0
    %136 = vmatprep.subr.bf16.mxu0 0
    %137 = vmatpush1.bf16.msra.mxu0 0
    %138 = vmatprep.subr.bf16.mxu0 0
    %139 = vmatpush1.bf16.msra.mxu0 %v118
    %140 = vmatprep.subr.bf16.mxu0 0
    %141 = vmatpush2.bf16.msra.mxu0 0
    %142 = vmatprep.subr.bf16.mxu0 0
    %143 = vmatpush2.bf16.msra.mxu0 0
    %144 = vmatprep.subr.bf16.mxu0 0
    %145 = vmatpush2.bf16.msra.mxu0 0
    %146 = vmatprep.subr.bf16.mxu0 0
    %147 = vmatpush2.bf16.msra.mxu0 0
    %148 = vmatprep.subr.bf16.mxu0 0
    %149 = vmatpush2.bf16.msra.mxu0 0
    %150 = vmatprep.subr.bf16.mxu0 0
    %151 = vmatpush2.bf16.msra.mxu0 0
    %152 = vmatprep.subr.bf16.mxu0 0
    %153 = vmatpush2.bf16.msra.mxu0 0
    %154 = vmatprep.subr.bf16.mxu0 0
    %155 = vmatpush2.bf16.msra.mxu0 0
    %156 = vmatprep.mubr.bf16.mxu0 0
    %157 = vmatmul.mubr.bf16.gmra.mxu0 %v122
    %v158 = vpop.f32.mrf.mxu0
    %v159 = vadd.f32 %v113, %v158
    %v160 = vpop.f32.mrf.mxu0
    %v161 = vpop.f32.mrf.mxu0
    %v162 = vpop.f32.mrf.mxu0
    %163 = vdwg.mxu0
    %164 = vadd.xlane.f32.xlu0 %v159
    %v165 = vpop.xlane.xlu0 %164
    %v166 = vrcp.pop 128.0
    %v167 = vmul.f32 %v165, %v166
    %v168 = vsub.f32 %v159, %v167
    %v169 = vmul.f32 %v168, %v168
    %170 = vadd.xlane.f32.xlu0 %v169
    %v171 = vpop.xlane.xlu0 %170
    %v172 = vmul.f32 %v171, %v166
    %v173 = vadd.f32 %v172, 1e-05
    %v174 = vrsqrt.pop %v173
    %v175 = vmul.f32 %v168, %v174
    %v176 = vlaneseq
    %v177 = vshrl.u32 %v176, 7
    %v178 = vsub.s32 1, %v177
    %v179 = vrot.slane %v104, %v178
    %v180 = vmul.f32 %v175, %v179
    %v181 = vlaneseq
    %v182 = vshrl.u32 %v181, 7
    %v183 = vsub.s32 2, %v182
    %v184 = vrot.slane %v104, %v183
    %v185 = vadd.f32 %v180, %v184
    %v186 = vmax.f32 %v185, 0.0
    %v187 = vpack.c.bf16 %v186, %v186
    %v188 = vld [vmem:[#allocation6] sm:$0xf]
    %v189 = vld [vmem:[#allocation6 + $0x4] sm:$0xf]
    %v190 = vld [vmem:[#allocation6 + $0x8] sm:$0xf]
    %v191 = vld [vmem:[#allocation6 + $0xc] sm:$0xf]
    %v192 = vld [vmem:[#allocation6 + $0x10] sm:$0xf]
    %v193 = vld [vmem:[#allocation6 + $0x14] sm:$0xf]
    %v194 = vld [vmem:[#allocation6 + $0x18] sm:$0xf]
    %v195 = vld [vmem:[#allocation6 + $0x1c] sm:$0xf]
    %v196 = vld [vmem:[#allocation6 + $0x20] sm:$0xf]
    %v197 = vld [vmem:[#allocation6 + $0x24] sm:$0xf]
    %v198 = vld [vmem:[#allocation6 + $0x28] sm:$0xf]
    %v199 = vld [vmem:[#allocation6 + $0x2c] sm:$0xf]
    %v200 = vld [vmem:[#allocation6 + $0x30] sm:$0xf]
    %v201 = vld [vmem:[#allocation6 + $0x34] sm:$0xf]
    %v202 = vld [vmem:[#allocation6 + $0x38] sm:$0xf]
    %v203 = vld [vmem:[#allocation6 + $0x3c] sm:$0xf]
    %v204 = vlaneseq
    %v205 = vshrl.u32 %v204, 7
    %v206 = vsub.s32 3, %v205
    %v207 = vrot.slane %v104, %v206
    %v224 = vunpack.c.l.b16 %v188
    %v225 = vunpack.c.l.b16 %v189
    %v226 = vunpack.c.l.b16 %v190
    %v227 = vunpack.c.l.b16 %v191
    %v228 = vunpack.c.l.b16 %v192
    %v229 = vunpack.c.l.b16 %v193
    %v230 = vunpack.c.l.b16 %v194
    %v231 = vunpack.c.l.b16 %v195
    %v232 = vunpack.c.l.b16 %v196
    %v233 = vunpack.c.l.b16 %v197
    %v234 = vunpack.c.l.b16 %v198
    %v235 = vunpack.c.l.b16 %v199
    %v236 = vunpack.c.l.b16 %v200
    %v237 = vunpack.c.l.b16 %v201
    %v238 = vunpack.c.l.b16 %v202
    %v239 = vunpack.c.l.b16 %v203
    %v240 = vpack.c.b16 %v225, %v224
    %v241 = vpack.c.b16 %v227, %v226
    %v242 = vpack.c.b16 %v229, %v228
    %v243 = vpack.c.b16 %v231, %v230
    %v244 = vpack.c.b16 %v233, %v232
    %v245 = vpack.c.b16 %v235, %v234
    %v246 = vpack.c.b16 %v237, %v236
    %v247 = vpack.c.b16 %v239, %v238
    %256 = vmatprep.subr.bf16.mxu0 0
    %257 = vmatpush1.bf16.msra.mxu0 %v247
    %258 = vmatprep.subr.bf16.mxu0 0
    %259 = vmatpush1.bf16.msra.mxu0 %v246
    %260 = vmatprep.subr.bf16.mxu0 0
    %261 = vmatpush1.bf16.msra.mxu0 %v245
    %262 = vmatprep.subr.bf16.mxu0 0
    %263 = vmatpush1.bf16.msra.mxu0 %v244
    %264 = vmatprep.subr.bf16.mxu0 0
    %265 = vmatpush1.bf16.msra.mxu0 %v243
    %266 = vmatprep.subr.bf16.mxu0 0
    %267 = vmatpush1.bf16.msra.mxu0 %v242
    %268 = vmatprep.subr.bf16.mxu0 0
    %269 = vmatpush1.bf16.msra.mxu0 %v241
    %270 = vmatprep.subr.bf16.mxu0 0
    %271 = vmatpush1.bf16.msra.mxu0 %v240
    %272 = vmatprep.subr.bf16.mxu0 0
    %273 = vmatpush2.bf16.msra.mxu0 0
    %274 = vmatprep.subr.bf16.mxu0 0
    %275 = vmatpush2.bf16.msra.mxu0 0
    %276 = vmatprep.subr.bf16.mxu0 0
    %277 = vmatpush2.bf16.msra.mxu0 0
    %278 = vmatprep.subr.bf16.mxu0 0
    %279 = vmatpush2.bf16.msra.mxu0 0
    %280 = vmatprep.subr.bf16.mxu0 0
    %281 = vmatpush2.bf16.msra.mxu0 0
    %282 = vmatprep.subr.bf16.mxu0 0
    %283 = vmatpush2.bf16.msra.mxu0 0
    %284 = vmatprep.subr.bf16.mxu0 0
    %285 = vmatpush2.bf16.msra.mxu0 0
    %286 = vmatprep.subr.bf16.mxu0 0
    %287 = vmatpush2.bf16.msra.mxu0 0
    %288 = vmatprep.mubr.bf16.mxu0 0
    %289 = vmatmul.mubr.bf16.gmra.mxu0 %v187
    %v290 = vpop.f32.mrf.mxu0
    %v291 = vadd.f32 %v207, %v290
    %v292 = vpop.f32.mrf.mxu0
    %v293 = vpop.f32.mrf.mxu0
    %v294 = vpop.f32.mrf.mxu0
    %295 = vdwg.mxu0
    %296 = vadd.xlane.f32.xlu0 %v291
    %v297 = vpop.xlane.xlu0 %296
    %v298 = vmul.f32 %v297, %v166
    %v299 = vsub.f32 %v291, %v298
    %v300 = vmul.f32 %v299, %v299
    %301 = vadd.xlane.f32.xlu0 %v300
    %v302 = vpop.xlane.xlu0 %301
    %v303 = vmul.f32 %v302, %v166
    %v304 = vadd.f32 %v303, 1e-05
    %v305 = vrsqrt.pop %v304
    %v306 = vmul.f32 %v299, %v305
    %v307 = vlaneseq
    %v308 = vshrl.u32 %v307, 7
    %v309 = vsub.s32 4, %v308
    %v310 = vrot.slane %v104, %v309
    %v311 = vmul.f32 %v306, %v310
    %v312 = vlaneseq
    %v313 = vshrl.u32 %v312, 7
    %v314 = vsub.s32 5, %v313
    %v315 = vrot.slane %v104, %v314
    %v316 = vadd.f32 %v311, %v315
    %v317 = vmax.f32 %v316, 0.0
    %v318 = vpack.c.bf16 %v317, %v317
    %v319 = vld [vmem:[#allocation7] sm:$0xf]
    %v320 = vld [vmem:[#allocation7 + $0x4] sm:$0xf]
    %v321 = vld [vmem:[#allocation7 + $0x8] sm:$0xf]
    %v322 = vld [vmem:[#allocation7 + $0xc] sm:$0xf]
    %v323 = vld [vmem:[#allocation7 + $0x10] sm:$0xf]
    %v324 = vld [vmem:[#allocation7 + $0x14] sm:$0xf]
    %v325 = vld [vmem:[#allocation7 + $0x18] sm:$0xf]
    %v326 = vld [vmem:[#allocation7 + $0x1c] sm:$0xf]
    %v327 = vld [vmem:[#allocation7 + $0x20] sm:$0xf]
    %v328 = vld [vmem:[#allocation7 + $0x24] sm:$0xf]
    %v329 = vld [vmem:[#allocation7 + $0x28] sm:$0xf]
    %v330 = vld [vmem:[#allocation7 + $0x2c] sm:$0xf]
    %v331 = vld [vmem:[#allocation7 + $0x30] sm:$0xf]
    %v332 = vld [vmem:[#allocation7 + $0x34] sm:$0xf]
    %v333 = vld [vmem:[#allocation7 + $0x38] sm:$0xf]
    %v334 = vld [vmem:[#allocation7 + $0x3c] sm:$0xf]
    %v335 = vlaneseq
    %v336 = vshrl.u32 %v335, 7
    %v337 = vsub.s32 6, %v336
    %v338 = vrot.slane %v104, %v337
    %v355 = vunpack.c.l.b16 %v319
    %v356 = vunpack.c.l.b16 %v320
    %v357 = vunpack.c.l.b16 %v321
    %v358 = vunpack.c.l.b16 %v322
    %v359 = vunpack.c.l.b16 %v323
    %v360 = vunpack.c.l.b16 %v324
    %v361 = vunpack.c.l.b16 %v325
    %v362 = vunpack.c.l.b16 %v326
    %v363 = vunpack.c.l.b16 %v327
    %v364 = vunpack.c.l.b16 %v328
    %v365 = vunpack.c.l.b16 %v329
    %v366 = vunpack.c.l.b16 %v330
    %v367 = vunpack.c.l.b16 %v331
    %v368 = vunpack.c.l.b16 %v332
    %v369 = vunpack.c.l.b16 %v333
    %v370 = vunpack.c.l.b16 %v334
    %v371 = vpack.c.b16 %v356, %v355
    %v372 = vpack.c.b16 %v358, %v357
    %v373 = vpack.c.b16 %v360, %v359
    %v374 = vpack.c.b16 %v362, %v361
    %v375 = vpack.c.b16 %v364, %v363
    %v376 = vpack.c.b16 %v366, %v365
    %v377 = vpack.c.b16 %v368, %v367
    %v378 = vpack.c.b16 %v370, %v369
    %387 = vmatprep.subr.bf16.mxu0 0
    %388 = vmatpush1.bf16.msra.mxu0 %v378
    %389 = vmatprep.subr.bf16.mxu0 0
    %390 = vmatpush1.bf16.msra.mxu0 %v377
    %391 = vmatprep.subr.bf16.mxu0 0
    %392 = vmatpush1.bf16.msra.mxu0 %v376
    %393 = vmatprep.subr.bf16.mxu0 0
    %394 = vmatpush1.bf16.msra.mxu0 %v375
    %395 = vmatprep.subr.bf16.mxu0 0
    %396 = vmatpush1.bf16.msra.mxu0 %v374
    %397 = vmatprep.subr.bf16.mxu0 0
    %398 = vmatpush1.bf16.msra.mxu0 %v373
    %399 = vmatprep.subr.bf16.mxu0 0
    %400 = vmatpush1.bf16.msra.mxu0 %v372
    %401 = vmatprep.subr.bf16.mxu0 0
    %402 = vmatpush1.bf16.msra.mxu0 %v371
    %403 = vmatprep.subr.bf16.mxu0 0
    %404 = vmatpush2.bf16.msra.mxu0 0
    %405 = vmatprep.subr.bf16.mxu0 0
    %406 = vmatpush2.bf16.msra.mxu0 0
    %407 = vmatprep.subr.bf16.mxu0 0
    %408 = vmatpush2.bf16.msra.mxu0 0
    %409 = vmatprep.subr.bf16.mxu0 0
    %410 = vmatpush2.bf16.msra.mxu0 0
    %411 = vmatprep.subr.bf16.mxu0 0
    %412 = vmatpush2.bf16.msra.mxu0 0
    %413 = vmatprep.subr.bf16.mxu0 0
    %414 = vmatpush2.bf16.msra.mxu0 0
    %415 = vmatprep.subr.bf16.mxu0 0
    %416 = vmatpush2.bf16.msra.mxu0 0
    %417 = vmatprep.subr.bf16.mxu0 0
    %418 = vmatpush2.bf16.msra.mxu0 0
    %419 = vmatprep.mubr.bf16.mxu0 0
    %420 = vmatmul.mubr.bf16.gmra.mxu0 %v318
    %v421 = vpop.f32.mrf.mxu0
    %v422 = vadd.f32 %v338, %v421
    %v423 = vpop.f32.mrf.mxu0
    %v424 = vpop.f32.mrf.mxu0
    %v425 = vpop.f32.mrf.mxu0
    %426 = vdwg.mxu0
    %427 = vadd.xlane.f32.xlu0 %v422
    %v428 = vpop.xlane.xlu0 %427
    %v429 = vmul.f32 %v428, %v166
    %v430 = vsub.f32 %v422, %v429
    %v431 = vmul.f32 %v430, %v430
    %432 = vadd.xlane.f32.xlu0 %v431
    %v433 = vpop.xlane.xlu0 %432
    %v434 = vmul.f32 %v433, %v166
    %v435 = vadd.f32 %v434, 1e-05
    %v436 = vrsqrt.pop %v435
    %v437 = vmul.f32 %v430, %v436
    %v438 = vlaneseq
    %v439 = vshrl.u32 %v438, 7
    %v440 = vsub.s32 7, %v439
    %v441 = vrot.slane %v104, %v440
    %v442 = vmul.f32 %v437, %v441
    %v443 = vlaneseq
    %v444 = vshrl.u32 %v443, 7
    %v445 = vsub.s32 0, %v444
    %v446 = vrot.slane %v105, %v445
    %v447 = vadd.f32 %v442, %v446
    %v448 = vmax.f32 %v447, 0.0
    %v449 = vpack.c.bf16 %v448, %v448
    %v450 = vld [vmem:[#allocation9] sm:$0xf]
    %v451 = vld [vmem:[#allocation9 + $0x4] sm:$0xf]
    %v452 = vld [vmem:[#allocation9 + $0x8] sm:$0xf]
    %v453 = vld [vmem:[#allocation9 + $0xc] sm:$0xf]
    %v454 = vld [vmem:[#allocation9 + $0x10] sm:$0xf]
    %v455 = vld [vmem:[#allocation9 + $0x14] sm:$0xf]
    %v456 = vld [vmem:[#allocation9 + $0x18] sm:$0xf]
    %v457 = vld [vmem:[#allocation9 + $0x1c] sm:$0xf]
    %v458 = vld [vmem:[#allocation9 + $0x20] sm:$0xf]
    %v459 = vld [vmem:[#allocation9 + $0x24] sm:$0xf]
    %v460 = vld [vmem:[#allocation9 + $0x28] sm:$0xf]
    %v461 = vld [vmem:[#allocation9 + $0x2c] sm:$0xf]
    %v462 = vld [vmem:[#allocation9 + $0x30] sm:$0xf]
    %v463 = vld [vmem:[#allocation9 + $0x34] sm:$0xf]
    %v464 = vld [vmem:[#allocation9 + $0x38] sm:$0xf]
    %v465 = vld [vmem:[#allocation9 + $0x3c] sm:$0xf]
    %v466 = vlaneseq
    %v467 = vshrl.u32 %v466, 7
    %v468 = vsub.s32 1, %v467
    %v469 = vrot.slane %v105, %v468
    %v486 = vunpack.c.l.b16 %v450
    %v487 = vunpack.c.l.b16 %v451
    %v488 = vunpack.c.l.b16 %v452
    %v489 = vunpack.c.l.b16 %v453
    %v490 = vunpack.c.l.b16 %v454
    %v491 = vunpack.c.l.b16 %v455
    %v492 = vunpack.c.l.b16 %v456
    %v493 = vunpack.c.l.b16 %v457
    %v494 = vunpack.c.l.b16 %v458
    %v495 = vunpack.c.l.b16 %v459
    %v496 = vunpack.c.l.b16 %v460
    %v497 = vunpack.c.l.b16 %v461
    %v498 = vunpack.c.l.b16 %v462
    %v499 = vunpack.c.l.b16 %v463
    %v500 = vunpack.c.l.b16 %v464
    %v501 = vunpack.c.l.b16 %v465
    %v502 = vpack.c.b16 %v487, %v486
    %v503 = vpack.c.b16 %v489, %v488
    %v504 = vpack.c.b16 %v491, %v490
    %v505 = vpack.c.b16 %v493, %v492
    %v506 = vpack.c.b16 %v495, %v494
    %v507 = vpack.c.b16 %v497, %v496
    %v508 = vpack.c.b16 %v499, %v498
    %v509 = vpack.c.b16 %v501, %v500
    %518 = vmatprep.subr.bf16.mxu0 0
    %519 = vmatpush1.bf16.msra.mxu0 %v509
    %520 = vmatprep.subr.bf16.mxu0 0
    %521 = vmatpush1.bf16.msra.mxu0 %v508
    %522 = vmatprep.subr.bf16.mxu0 0
    %523 = vmatpush1.bf16.msra.mxu0 %v507
    %524 = vmatprep.subr.bf16.mxu0 0
    %525 = vmatpush1.bf16.msra.mxu0 %v506
    %526 = vmatprep.subr.bf16.mxu0 0
    %527 = vmatpush1.bf16.msra.mxu0 %v505
    %528 = vmatprep.subr.bf16.mxu0 0
    %529 = vmatpush1.bf16.msra.mxu0 %v504
    %530 = vmatprep.subr.bf16.mxu0 0
    %531 = vmatpush1.bf16.msra.mxu0 %v503
    %532 = vmatprep.subr.bf16.mxu0 0
    %533 = vmatpush1.bf16.msra.mxu0 %v502
    %534 = vmatprep.subr.bf16.mxu0 0
    %535 = vmatpush2.bf16.msra.mxu0 0
    %536 = vmatprep.subr.bf16.mxu0 0
    %537 = vmatpush2.bf16.msra.mxu0 0
    %538 = vmatprep.subr.bf16.mxu0 0
    %539 = vmatpush2.bf16.msra.mxu0 0
    %540 = vmatprep.subr.bf16.mxu0 0
    %541 = vmatpush2.bf16.msra.mxu0 0
    %542 = vmatprep.subr.bf16.mxu0 0
    %543 = vmatpush2.bf16.msra.mxu0 0
    %544 = vmatprep.subr.bf16.mxu0 0
    %545 = vmatpush2.bf16.msra.mxu0 0
    %546 = vmatprep.subr.bf16.mxu0 0
    %547 = vmatpush2.bf16.msra.mxu0 0
    %548 = vmatprep.subr.bf16.mxu0 0
    %549 = vmatpush2.bf16.msra.mxu0 0
    %550 = vmatprep.mubr.bf16.mxu0 0
    %551 = vmatmul.mubr.bf16.gmra.mxu0 %v449
    %v552 = vpop.f32.mrf.mxu0
    %v553 = vadd.f32 %v469, %v552
    %v554 = vpop.f32.mrf.mxu0
    %v555 = vpop.f32.mrf.mxu0
    %v556 = vpop.f32.mrf.mxu0
    %557 = vdwg.mxu0
    %vm558 = vcmask 31744
    %559 = vst.msk [vmem:[%s6] sm:$0xff] %vm558, %v553
    // Predicated region
    $region50: #{tpu_custom_call.1} parent=1 // pred_check
      _
    $region51: #{tpu_custom_call.1} parent=1 // pred_check_branch
      %561 = sbr.rel (0) target = $region53
    $region52: #{tpu_custom_call.1} parent=1 // pred_region
      _
    $region53: #{tpu_custom_call.1} parent=1 // pred_fallthru
      _
    // Predicated region
    $region54: #{tpu_custom_call.1} parent=1 // pred_check
      _
    $region55: #{tpu_custom_call.1} parent=1 // pred_check_branch
      %563 = sbr.rel (0) target = $region57
    $region56: #{tpu_custom_call.1} parent=1 // pred_region
      _
    $region57: #{tpu_custom_call.1} parent=1 // pred_fallthru
      _
    %564 = vsyncpa [#allocation3], 1
    %565 = vsyncpa [#allocation5], 1
    %566 = vsyncpa [#allocation8], 1
    %567 = vsyncpa [#allocation11], 1

</llo_original>
